<compile_context>
chip_gen: v7x
topology: tpu7x:2x2x1
jax: 0.10.0
libtpu: 0.0.40
codegen_flags: <defaults>
</compile_context>

<pallas_src>
import functools

import jax
import jax.numpy as jnp
from jax.experimental import pallas as pl
from jax.experimental.pallas import tpu as pltpu

SIZE_1 = 3   # params['channel_att']['size_1']
SIZE_2 = 5   # params['channel_att']['size_2']


def _channel_att_kernel(x_ref, w1_ref, b1_ref, w2_ref, b2_ref, o_ref,
                        *, inv_n, c):
    # ---- SiLU + global average pool, fused into one reduction expression so
    #      no full-tile f32 temporary stays live across the conv path. -------
    xf = x_ref[...].astype(jnp.float32)                          # (bt, C, N)
    # SiLU(x) = x*sigmoid(x) = 0.5*x*(1 + tanh(x/2)); tanh = 1 EUP op
    # (sigmoid = exp + reciprocal = 2), halving EUP pressure on v7x.
    gap = jnp.sum(0.5 * xf * (1.0 + jnp.tanh(0.5 * xf)), axis=-1) * inv_n  # (bt, C)

    # ---- tiny 1->1 channel convs (k=3 then k=5) on the pooled vector.
    #      Band matrices are built in-kernel from the SMEM taps and applied as
    #      a masked broadcast-FMA + sublane reduction: exact f32 on the (idle)
    #      VALU/XLU slots, no (C,C) HBM inputs, no reduced-precision MXU. ----
    row = jax.lax.broadcasted_iota(jnp.int32, (c, c), 0)         # i
    col = jax.lax.broadcasted_iota(jnp.int32, (c, c), 1)         # j

    def conv1d_same(v, w_ref, bias_ref):
        k = w_ref.shape[0]
        idx = row - col + k // 2                      # band[i, j] = w[i - j + p]
        band = jnp.zeros((c, c), jnp.float32)
        for t in range(k):                            # k in {3, 5}, static unroll
            band = jnp.where(idx == t, w_ref[t], band)
        # out[b, j] = sum_i v[b, i] * band[i, j]      (exact f32)
        return jnp.sum(v[:, :, None] * band[None, :, :], axis=1) + bias_ref[0]

    h = conv1d_same(gap, w1_ref, b1_ref)              # (bt, C)
    h = h * jax.nn.sigmoid(h)                         # SiLU on the tiny vector
    att = conv1d_same(h, w2_ref, b2_ref)              # (bt, C)

    # ---- residual: re-read x in its native dtype, broadcast-add att. --------
    o_ref[...] = x_ref[...] + att[:, :, None].astype(o_ref.dtype)


def _pick_batch_tile(b, c, n, itemsize):
    """Generation-aware batch tile + VMEM limit.

    Budget: 2x input double-buffer + 2x output double-buffer + ~2 tile-sized
    f32 temporaries must fit under the per-kernel VMEM limit.
      * v5e/v6e (128 MiB physical): ~100 MiB limit, ~10 MiB x-tiles.
      * v7x     ( 64 MiB physical): ~52 MiB limit,  ~7 MiB x-tiles, and prefer
        an even number of parallel grid steps to feed both TensorCores.
    """
    try:
        vmem_cap = pltpu.get_tpu_info().vmem_capacity_bytes
    except Exception:                       # conservative fallback
        vmem_cap = 64 << 20
    small_vmem = vmem_cap < (100 << 20)     # v7x-class part (also 2 TCs/chip)
    vmem_limit = (52 << 20) if small_vmem else (100 << 20)
    tile_budget = (7 << 20) if small_vmem else (10 << 20)

    per_batch_tile = c * n * itemsize                       # one batch row of x
    per_batch_live = 4 * per_batch_tile + 2 * c * n * 4     # in/out dbl-buf + f32 temps

    bt = min(
        b,
        max(1, tile_budget // per_batch_tile),
        max(1, (vmem_limit - (4 << 20)) // per_batch_live),
    )

    if small_vmem and b >= 2:
        # Two TensorCores share the "parallel" grid axis: guarantee >= 2 (and
        # an even number of) grid steps so neither core sits idle.
        steps = pl.cdiv(b, bt)
        if steps < 2:
            steps = 2
        elif steps % 2:
            steps += 1
        bt = pl.cdiv(b, steps)

    return int(bt), vmem_limit


def channel_att_forward(x, w1, b1, w2, b2):
    """x: (B, C, H, W) -> (B, C, H, W).  w1:(3,), b1:(1,), w2:(5,), b2:(1,)."""
    b, c, hh, ww = x.shape
    n = hh * ww

    x_flat = x.reshape(b, c, n)                       # free; no padding pass

    w1f = w1.reshape(-1).astype(jnp.float32)          # (3,) SMEM taps
    b1f = b1.reshape(-1).astype(jnp.float32)          # (1,)
    w2f = w2.reshape(-1).astype(jnp.float32)          # (5,)
    b2f = b2.reshape(-1).astype(jnp.float32)          # (1,)

    bt, vmem_limit = _pick_batch_tile(b, c, n, x.dtype.itemsize)
    grid = (int(pl.cdiv(b, bt)),)                     # partial last block is masked

    kernel = functools.partial(_channel_att_kernel, inv_n=1.0 / float(n), c=c)

    out_flat = pl.pallas_call(
        kernel,
        out_shape=jax.ShapeDtypeStruct((b, c, n), x.dtype),
        grid_spec=pltpu.PrefetchScalarGridSpec(
            num_scalar_prefetch=0,
            grid=grid,
            in_specs=[
                # Full (C, N) as the last two block dims (equal to the array
                # dims, so legal even when N % 128 != 0).  If DMA were still
                # exposed on v5e/v6e, sweep pipeline_mode=pl.Buffered(3) here.
                pl.BlockSpec((bt, c, n), lambda i: (i, 0, 0)),       # x tile
                pl.BlockSpec(memory_space=pltpu.MemorySpace.SMEM),   # w1 taps
                pl.BlockSpec(memory_space=pltpu.MemorySpace.SMEM),   # b1
                pl.BlockSpec(memory_space=pltpu.MemorySpace.SMEM),   # w2 taps
                pl.BlockSpec(memory_space=pltpu.MemorySpace.SMEM),   # b2
            ],
            out_specs=pl.BlockSpec((bt, c, n), lambda i: (i, 0, 0)),
        ),
        compiler_params=pltpu.CompilerParams(
            dimension_semantics=("parallel",),
            vmem_limit_bytes=vmem_limit,
        ),
    )(x_flat, w1f, b1f, w2f, b2f)

    return out_flat.reshape(b, c, hh, ww)             # free metadata reshape


def channel_att_ref(x, w1, b1, w2, b2):
    """Pure-JAX reference mirroring the PyTorch ChannelAtt.forward."""
    b, c, hh, ww = x.shape
    xs = x * jax.nn.sigmoid(x)                        # SiLU
    gap = xs.mean(axis=(2, 3))                        # (B, C)

    def conv1d_same(v, w, bias):
        w = w.reshape(-1)
        k = w.shape[0]
        p = k // 2
        vp = jnp.pad(v, ((0, 0), (p, p)))
        out = sum(w[i] * vp[:, i:i + c] for i in range(k))
        return out + bias.reshape(-1)[0]

    h = conv1d_same(gap, w1, b1)
    h = h * jax.nn.sigmoid(h)                         # SiLU
    att = conv1d_same(h, w2, b2)                      # (B, C)
    return x + att[:, :, None, None]


if __name__ == "__main__":
    # 14x14 exercises the unpadded N=196 path (masked tail vreg, exact mean).
    B, C, H, W = 2, 32, 14, 14

    key = jax.random.PRNGKey(0)
    k_x, k_w1, k_b1, k_w2, k_b2 = jax.random.split(key, 5)

    x = jax.random.normal(k_x, (B, C, H, W), dtype=jnp.float32)

    # Conv1d(1, 1, k) weights/biases (PyTorch shapes (1,1,k)/(1,) squeezed).
    w1 = 0.3 * jax.random.normal(k_w1, (SIZE_1,), dtype=jnp.float32)
    b1 = 0.1 * jax.random.normal(k_b1, (1,), dtype=jnp.float32)
    w2 = 0.3 * jax.random.normal(k_w2, (SIZE_2,), dtype=jnp.float32)
    b2 = 0.1 * jax.random.normal(k_b2, (1,), dtype=jnp.float32)

    out = jax.block_until_ready(channel_att_forward(x, w1, b1, w2, b2))
    ref = channel_att_ref(x, w1, b1, w2, b2)

    assert out.shape == (B, C, H, W)
    max_err = float(jnp.max(jnp.abs(out - ref)))
    assert jnp.allclose(out, ref, atol=1e-4, rtol=1e-4), max_err

    print("KERNEL_OK")
</pallas_src>

<mosaic_0001>
module attributes {stable_mosaic.version = 11 : i64} {
  func.func @_channel_att_kernel(%arg0: i32, %arg1: memref<1x32x196xf32, #tpu.memory_space<vmem>>, %arg2: memref<3xf32, #tpu.memory_space<smem>>, %arg3: memref<1xf32, #tpu.memory_space<smem>>, %arg4: memref<5xf32, #tpu.memory_space<smem>>, %arg5: memref<1xf32, #tpu.memory_space<smem>>, %arg6: memref<1x32x196xf32, #tpu.memory_space<vmem>>) attributes {dimension_semantics = [#tpu.dimension_semantics<parallel>], iteration_bounds = array<i64: 2>, scalar_prefetch = 0 : i64, scratch_operands = 0 : i64, tpu.core_type = #tpu.core_type<tc>, window_params = [{transform_indices = @transform_0, window_bounds = array<i64: 1, 32, 196>}, {transform_indices = @transform_1, window_bounds = array<i64: 3>}, {transform_indices = @transform_2, window_bounds = array<i64: 1>}, {transform_indices = @transform_3, window_bounds = array<i64: 5>}, {transform_indices = @transform_4, window_bounds = array<i64: 1>}, {transform_indices = @transform_5, window_bounds = array<i64: 1, 32, 196>}]} {
    %c0 = arith.constant 0 : index
    %c0_0 = arith.constant 0 : index
    %c0_1 = arith.constant 0 : index
    %0 = vector.load %arg1[%c0, %c0_0, %c0_1] : memref<1x32x196xf32, #tpu.memory_space<vmem>>, vector<1x32x196xf32>
    %cst = arith.constant 5.000000e-01 : f32
    %1 = vector.broadcast %cst : f32 to vector<1x32x196xf32>
    %2 = arith.mulf %1, %0 : vector<1x32x196xf32>
    %cst_2 = arith.constant 5.000000e-01 : f32
    %3 = vector.broadcast %cst_2 : f32 to vector<1x32x196xf32>
    %4 = arith.mulf %3, %0 : vector<1x32x196xf32>
    %5 = math.tanh %4 : vector<1x32x196xf32>
    %cst_3 = arith.constant 1.000000e+00 : f32
    %6 = vector.broadcast %cst_3 : f32 to vector<1x32x196xf32>
    %7 = arith.addf %6, %5 : vector<1x32x196xf32>
    %8 = arith.mulf %2, %7 : vector<1x32x196xf32>
    %cst_4 = arith.constant dense<0.000000e+00> : vector<1x32xf32>
    %9 = vector.multi_reduction <add>, %8, %cst_4 [2] : vector<1x32x196xf32> to vector<1x32xf32>
    %cst_5 = arith.constant 0.00510204071 : f32
    %10 = vector.broadcast %cst_5 : f32 to vector<1x32xf32>
    %11 = arith.mulf %9, %10 : vector<1x32xf32>
    %12 = tpu.iota {dimensions = array<i32: 0>} : vector<32x32xi32>
    %13 = tpu.iota {dimensions = array<i32: 1>} : vector<32x32xi32>
    %14 = arith.subi %12, %13 : vector<32x32xi32>
    %c1_i32 = arith.constant 1 : i32
    %15 = vector.broadcast %c1_i32 : i32 to vector<32x32xi32>
    %16 = arith.addi %14, %15 : vector<32x32xi32>
    %cst_6 = arith.constant 0.000000e+00 : f32
    %17 = vector.broadcast %cst_6 : f32 to vector<32x32xf32>
    %c0_i32 = arith.constant 0 : i32
    %18 = vector.broadcast %c0_i32 : i32 to vector<32x32xi32>
    %19 = arith.cmpi eq, %16, %18 : vector<32x32xi32>
    %c0_7 = arith.constant 0 : index
    %20 = memref.load %arg2[%c0_7] : memref<3xf32, #tpu.memory_space<smem>>
    %21 = vector.broadcast %20 : f32 to vector<32x32xf32>
    %22 = arith.select %19, %21, %17 : vector<32x32xi1>, vector<32x32xf32>
    %c1_i32_8 = arith.constant 1 : i32
    %23 = vector.broadcast %c1_i32_8 : i32 to vector<32x32xi32>
    %24 = arith.cmpi eq, %16, %23 : vector<32x32xi32>
    %c1 = arith.constant 1 : index
    %25 = memref.load %arg2[%c1] : memref<3xf32, #tpu.memory_space<smem>>
    %26 = vector.broadcast %25 : f32 to vector<32x32xf32>
    %27 = arith.select %24, %26, %22 : vector<32x32xi1>, vector<32x32xf32>
    %c2_i32 = arith.constant 2 : i32
    %28 = vector.broadcast %c2_i32 : i32 to vector<32x32xi32>
    %29 = arith.cmpi eq, %16, %28 : vector<32x32xi32>
    %c2 = arith.constant 2 : index
    %30 = memref.load %arg2[%c2] : memref<3xf32, #tpu.memory_space<smem>>
    %31 = vector.broadcast %30 : f32 to vector<32x32xf32>
    %32 = arith.select %29, %31, %27 : vector<32x32xi1>, vector<32x32xf32>
    %33 = vector.shape_cast %11 : vector<1x32xf32> to vector<1x32x1xf32>
    %34 = vector.shape_cast %32 : vector<32x32xf32> to vector<1x32x32xf32>
    %35 = vector.broadcast %33 : vector<1x32x1xf32> to vector<1x32x32xf32>
    %36 = arith.mulf %35, %34 : vector<1x32x32xf32>
    %cst_9 = arith.constant dense<0.000000e+00> : vector<1x32xf32>
    %37 = vector.multi_reduction <add>, %36, %cst_9 [1] : vector<1x32x32xf32> to vector<1x32xf32>
    %c0_10 = arith.constant 0 : index
    %38 = memref.load %arg3[%c0_10] : memref<1xf32, #tpu.memory_space<smem>>
    %39 = vector.broadcast %38 : f32 to vector<1x32xf32>
    %40 = arith.addf %37, %39 : vector<1x32xf32>
    %41 = arith.negf %40 : vector<1x32xf32>
    %42 = math.exp %41 : vector<1x32xf32>
    %cst_11 = arith.constant 1.000000e+00 : f32
    %43 = vector.broadcast %cst_11 : f32 to vector<1x32xf32>
    %44 = arith.addf %43, %42 : vector<1x32xf32>
    %45 = arith.divf %43, %44 : vector<1x32xf32>
    %46 = arith.mulf %40, %45 : vector<1x32xf32>
    %47 = arith.subi %12, %13 : vector<32x32xi32>
    %c2_i32_12 = arith.constant 2 : i32
    %48 = vector.broadcast %c2_i32_12 : i32 to vector<32x32xi32>
    %49 = arith.addi %47, %48 : vector<32x32xi32>
    %cst_13 = arith.constant 0.000000e+00 : f32
    %50 = vector.broadcast %cst_13 : f32 to vector<32x32xf32>
    %c0_i32_14 = arith.constant 0 : i32
    %51 = vector.broadcast %c0_i32_14 : i32 to vector<32x32xi32>
    %52 = arith.cmpi eq, %49, %51 : vector<32x32xi32>
    %c0_15 = arith.constant 0 : index
    %53 = memref.load %arg4[%c0_15] : memref<5xf32, #tpu.memory_space<smem>>
    %54 = vector.broadcast %53 : f32 to vector<32x32xf32>
    %55 = arith.select %52, %54, %50 : vector<32x32xi1>, vector<32x32xf32>
    %c1_i32_16 = arith.constant 1 : i32
    %56 = vector.broadcast %c1_i32_16 : i32 to vector<32x32xi32>
    %57 = arith.cmpi eq, %49, %56 : vector<32x32xi32>
    %c1_17 = arith.constant 1 : index
    %58 = memref.load %arg4[%c1_17] : memref<5xf32, #tpu.memory_space<smem>>
    %59 = vector.broadcast %58 : f32 to vector<32x32xf32>
    %60 = arith.select %57, %59, %55 : vector<32x32xi1>, vector<32x32xf32>
    %c2_i32_18 = arith.constant 2 : i32
    %61 = vector.broadcast %c2_i32_18 : i32 to vector<32x32xi32>
    %62 = arith.cmpi eq, %49, %61 : vector<32x32xi32>
    %c2_19 = arith.constant 2 : index
    %63 = memref.load %arg4[%c2_19] : memref<5xf32, #tpu.memory_space<smem>>
    %64 = vector.broadcast %63 : f32 to vector<32x32xf32>
    %65 = arith.select %62, %64, %60 : vector<32x32xi1>, vector<32x32xf32>
    %c3_i32 = arith.constant 3 : i32
    %66 = vector.broadcast %c3_i32 : i32 to vector<32x32xi32>
    %67 = arith.cmpi eq, %49, %66 : vector<32x32xi32>
    %c3 = arith.constant 3 : index
    %68 = memref.load %arg4[%c3] : memref<5xf32, #tpu.memory_space<smem>>
    %69 = vector.broadcast %68 : f32 to vector<32x32xf32>
    %70 = arith.select %67, %69, %65 : vector<32x32xi1>, vector<32x32xf32>
    %c4_i32 = arith.constant 4 : i32
    %71 = vector.broadcast %c4_i32 : i32 to vector<32x32xi32>
    %72 = arith.cmpi eq, %49, %71 : vector<32x32xi32>
    %c4 = arith.constant 4 : index
    %73 = memref.load %arg4[%c4] : memref<5xf32, #tpu.memory_space<smem>>
    %74 = vector.broadcast %73 : f32 to vector<32x32xf32>
    %75 = arith.select %72, %74, %70 : vector<32x32xi1>, vector<32x32xf32>
    %76 = vector.shape_cast %46 : vector<1x32xf32> to vector<1x32x1xf32>
    %77 = vector.shape_cast %75 : vector<32x32xf32> to vector<1x32x32xf32>
    %78 = vector.broadcast %76 : vector<1x32x1xf32> to vector<1x32x32xf32>
    %79 = arith.mulf %78, %77 : vector<1x32x32xf32>
    %cst_20 = arith.constant dense<0.000000e+00> : vector<1x32xf32>
    %80 = vector.multi_reduction <add>, %79, %cst_20 [1] : vector<1x32x32xf32> to vector<1x32xf32>
    %c0_21 = arith.constant 0 : index
    %81 = memref.load %arg5[%c0_21] : memref<1xf32, #tpu.memory_space<smem>>
    %82 = vector.broadcast %81 : f32 to vector<1x32xf32>
    %83 = arith.addf %80, %82 : vector<1x32xf32>
    %c0_22 = arith.constant 0 : index
    %c0_23 = arith.constant 0 : index
    %c0_24 = arith.constant 0 : index
    %84 = vector.load %arg1[%c0_22, %c0_23, %c0_24] : memref<1x32x196xf32, #tpu.memory_space<vmem>>, vector<1x32x196xf32>
    %85 = vector.shape_cast %83 : vector<1x32xf32> to vector<1x32x1xf32>
    %86 = vector.broadcast %85 : vector<1x32x1xf32> to vector<1x32x196xf32>
    %87 = arith.addf %84, %86 : vector<1x32x196xf32>
    %c0_25 = arith.constant 0 : index
    %c0_26 = arith.constant 0 : index
    %c0_27 = arith.constant 0 : index
    %88 = vector.load %arg6[%c0_25, %c0_26, %c0_27] : memref<1x32x196xf32, #tpu.memory_space<vmem>>, vector<1x32x196xf32>
    tpu.vector_store %arg6[%c0_25, %c0_26, %c0_27], %87 {strides = array<i32>} : memref<1x32x196xf32, #tpu.memory_space<vmem>>, vector<1x32x196xf32>,
    return
  }
  func.func @transform_0(%arg0: i32) -> (i32, i32, i32) {
    %c0_i32 = arith.constant 0 : i32
    %c0_i32_0 = arith.constant 0 : i32
    %c0_i32_1 = arith.constant 0 : i32
    return %arg0, %c0_i32, %c0_i32_0 : i32, i32, i32
  }
  func.func @transform_1(%arg0: i32) -> i32 {
    %c0_i32 = arith.constant 0 : i32
    %c0_i32_0 = arith.constant 0 : i32
    return %c0_i32 : i32
  }
  func.func @transform_2(%arg0: i32) -> i32 {
    %c0_i32 = arith.constant 0 : i32
    %c0_i32_0 = arith.constant 0 : i32
    return %c0_i32 : i32
  }
  func.func @transform_3(%arg0: i32) -> i32 {
    %c0_i32 = arith.constant 0 : i32
    %c0_i32_0 = arith.constant 0 : i32
    return %c0_i32 : i32
  }
  func.func @transform_4(%arg0: i32) -> i32 {
    %c0_i32 = arith.constant 0 : i32
    %c0_i32_0 = arith.constant 0 : i32
    return %c0_i32 : i32
  }
  func.func @transform_5(%arg0: i32) -> (i32, i32, i32) {
    %c0_i32 = arith.constant 0 : i32
    %c0_i32_0 = arith.constant 0 : i32
    %c0_i32_1 = arith.constant 0 : i32
    return %arg0, %c0_i32, %c0_i32_0 : i32, i32, i32
  }
}

</mosaic_0001>

<llo_original>
// kernel: tpu_custom_call.1
$region0: #{tpu_custom_call.1}
  #allocation0 [shape = 'u32[]', space=smem, size = 0x4, offset = 0x4, fixed_abs, tag = 'smem constant byte address 0x4 - core index']
  #allocation1 [shape = 'u32[144,128]{1,0:T(1,128)}', space=vmem, size = 0x12000, scoped, tag = 'internal scratch']
  #allocation2 [shape = 'f32[1]{0:T(128)S(6)}', space=smem, size = 0x200, scoped, tag = 'scoped memory for tpu_custom_call.1']
  #allocation3 [shape = 'f32[1]{0:T(128)S(6)}', space=smem, size = 0x200, scoped, tag = 'scoped memory for tpu_custom_call.1']
  %s0 = inlined_call_operand.hbm [shape: f32[2,32,196], index: 0, kind: input, shape index: {}]
  %s1 = inlined_call_operand.vmem [shape: f32[3], index: 1, kind: input, shape index: {}]
  %s2 = inlined_call_operand.<no memory space> [shape: f32[1], index: 2, kind: input, shape index: {}]
  %s3 = inlined_call_operand.vmem [shape: f32[5], index: 3, kind: input, shape index: {}]
  %s4 = inlined_call_operand.<no memory space> [shape: f32[1], index: 4, kind: input, shape index: {}]
  %s5 = inlined_call_operand.hbm [shape: f32[2,32,196], index: 5, kind: output, shape index: {}]
  %s6 = sld [smem:[#allocation0]]
  $region65: #{tpu_custom_call.1} parent=0
    _
  %s8 = ssub.s32 1, %s6
  %s9 = scalar_select 0, %s8, %s6
  %10 = sst [smem:[#allocation2]] %s2
  %11 = sst [smem:[#allocation3]] %s4
  $region1: #{tpu_custom_call.1} parent=0
    #allocation4 [shape = 'u8[65536]{0}', space=vmem, size = 0x10000, scoped, tag = 'input window, operand 0']
    #allocation5 [shape = 's32[2]{0}', space=sflag, size = 0x8, scoped, tag = 'scoped memory for tpu_custom_call.1']
    #allocation6 [shape = 's32[2]{0}', space=sflag, size = 0x8, scoped, tag = 'scoped memory for tpu_custom_call.1']
    #allocation7 [shape = 's32[2]{0}', space=sflag, size = 0x8, scoped, tag = 'scoped memory for tpu_custom_call.1']
    #allocation8 [shape = 'u8[512]{0}', space=smem, size = 0x200, scoped, tag = 'input window, operand 1, single buffered']
    #allocation9 [shape = 'u8[512]{0}', space=smem, size = 0x200, scoped, tag = 'input window, operand 3, single buffered']
    #allocation10 [shape = 's32[1]{0}', space=sflag, size = 0x4, scoped, tag = 'scoped memory for tpu_custom_call.1']
    #allocation11 [shape = 'u8[65536]{0}', space=vmem, size = 0x10000, scoped, tag = 'output window, operand 0']
    %12 = vsyncpa [#allocation5], 0
    %s13 = scalar_lea.sflag [#allocation5], 1
    %14 = vsyncpa %s13, 0
    %15 = vsyncpa [#allocation7], 0
    %16 = vsyncpa [#allocation10], 0
    %17 = vsyncpa [#allocation6], 0
    %s18 = scalar_lea.sflag [#allocation6], 1
    %19 = vsyncpa %s18, 0
    loop: start=0, step=1, limit=4
    $region2: #{tpu_custom_call.1} parent=1 // loop_pre_header
      _
    $region3: #{tpu_custom_call.1} parent=1 // loop_header
      %s21 = sphi 0, %s25
      %p22 = scmp.ge.s32.totalorder %s21, 4
      %s31 = sphi 0, %s33
      %s34 = sphi 0, %s31
      %s35 = sphi 0, %s34
      %s51 = sphi 0, %s35
      %s55 = sphi 0, %s55
      %s57 = sphi 0, %s55
      %s58 = sphi 0, %s57
      %s72 = sphi 0, %s58
      %s76 = sphi 0, %s76
      %s78 = sphi 0, %s76
      %s79 = sphi 0, %s78
      %s93 = sphi 0, %s79
      %s97 = sphi 0, %s97
      %s99 = sphi 0, %s97
      %s100 = sphi 0, %s99
      %s114 = sphi 0, %s100
      %s118 = sphi 0, %s118
      %s120 = sphi 0, %s118
      %s121 = sphi 0, %s120
      %s135 = sphi 0, %s121
      %s141 = sphi 0, %s143
      %s144 = sphi 0, %s141
      %s145 = sphi 0, %s144
      %s161 = sphi 0, %s145
    $region4: #{tpu_custom_call.1} parent=1 // loop_header_branch
      %24 = sbr.rel (%p22) target = $region8
    $region5: #{tpu_custom_call.1} parent=1 // loop_body
      %s26 = ssub.s32 %s21, 1
      %s27 = ssub.s32 %s21, 2
      %s28 = sadd.s32 %s21, 1
      %s29 = ssub.s32 %s21, %s28
      %p30 = scmp.eq.s32.totalorder %s29, 0
      %s32 = sadd.s32 %s31, 1
      %s33 = scalar_select %p30, %s31, %s32
      %p36 = pneg %p30
      %p37 = scmp.eq.s32.totalorder %s21, 1
      %p38 = por %p36, %p37
      %p39 = scmp.ne.s32.totalorder %s31, %s34
      %p40 = scmp.eq.s32.totalorder %s21, 0
      %p41 = por %p39, %p40
      %p42 = scmp.ne.s32.totalorder %s31, %s34
      %p43 = scmp.eq.s32.totalorder %s26, 1
      %p44 = por %p42, %p43
      %p45 = scmp.ne.s32.totalorder %s34, %s35
      %p46 = scmp.eq.s32.totalorder %s26, 0
      %p47 = por %p45, %p46
      %p48 = scmp.ne.s32.totalorder %s34, %s35
      %p49 = scmp.eq.s32.totalorder %s27, 1
      %p50 = por %p48, %p49
      %p52 = scmp.ne.s32.totalorder %s35, %s51
      %p53 = scmp.eq.s32.totalorder %s27, 0
      %p54 = por %p52, %p53
      %s56 = sadd.s32 %s55, 1
      %p59 = scmp.eq.s32.totalorder %s21, 1
      %p60 = scmp.ne.s32.totalorder %s55, %s57
      %p61 = scmp.eq.s32.totalorder %s21, 0
      %p62 = por %p60, %p61
      %p63 = scmp.ne.s32.totalorder %s55, %s57
      %p64 = scmp.eq.s32.totalorder %s26, 1
      %p65 = por %p63, %p64
      %p66 = scmp.ne.s32.totalorder %s57, %s58
      %p67 = scmp.eq.s32.totalorder %s26, 0
      %p68 = por %p66, %p67
      %p69 = scmp.ne.s32.totalorder %s57, %s58
      %p70 = scmp.eq.s32.totalorder %s27, 1
      %p71 = por %p69, %p70
      %p73 = scmp.ne.s32.totalorder %s58, %s72
      %p74 = scmp.eq.s32.totalorder %s27, 0
      %p75 = por %p73, %p74
      %s77 = sadd.s32 %s76, 1
      %p80 = scmp.eq.s32.totalorder %s21, 1
      %p81 = scmp.ne.s32.totalorder %s76, %s78
      %p82 = scmp.eq.s32.totalorder %s21, 0
      %p83 = por %p81, %p82
      %p84 = scmp.ne.s32.totalorder %s76, %s78
      %p85 = scmp.eq.s32.totalorder %s26, 1
      %p86 = por %p84, %p85
      %p87 = scmp.ne.s32.totalorder %s78, %s79
      %p88 = scmp.eq.s32.totalorder %s26, 0
      %p89 = por %p87, %p88
      %p90 = scmp.ne.s32.totalorder %s78, %s79
      %p91 = scmp.eq.s32.totalorder %s27, 1
      %p92 = por %p90, %p91
      %p94 = scmp.ne.s32.totalorder %s79, %s93
      %p95 = scmp.eq.s32.totalorder %s27, 0
      %p96 = por %p94, %p95
      %s98 = sadd.s32 %s97, 1
      %p101 = scmp.eq.s32.totalorder %s21, 1
      %p102 = scmp.ne.s32.totalorder %s97, %s99
      %p103 = scmp.eq.s32.totalorder %s21, 0
      %p104 = por %p102, %p103
      %p105 = scmp.ne.s32.totalorder %s97, %s99
      %p106 = scmp.eq.s32.totalorder %s26, 1
      %p107 = por %p105, %p106
      %p108 = scmp.ne.s32.totalorder %s99, %s100
      %p109 = scmp.eq.s32.totalorder %s26, 0
      %p110 = por %p108, %p109
      %p111 = scmp.ne.s32.totalorder %s99, %s100
      %p112 = scmp.eq.s32.totalorder %s27, 1
      %p113 = por %p111, %p112
      %p115 = scmp.ne.s32.totalorder %s100, %s114
      %p116 = scmp.eq.s32.totalorder %s27, 0
      %p117 = por %p115, %p116
      %s119 = sadd.s32 %s118, 1
      %p122 = scmp.eq.s32.totalorder %s21, 1
      %p123 = scmp.ne.s32.totalorder %s118, %s120
      %p124 = scmp.eq.s32.totalorder %s21, 0
      %p125 = por %p123, %p124
      %p126 = scmp.ne.s32.totalorder %s118, %s120
      %p127 = scmp.eq.s32.totalorder %s26, 1
      %p128 = por %p126, %p127
      %p129 = scmp.ne.s32.totalorder %s120, %s121
      %p130 = scmp.eq.s32.totalorder %s26, 0
      %p131 = por %p129, %p130
      %p132 = scmp.ne.s32.totalorder %s120, %s121
      %p133 = scmp.eq.s32.totalorder %s27, 1
      %p134 = por %p132, %p133
      %p136 = scmp.ne.s32.totalorder %s121, %s135
      %p137 = scmp.eq.s32.totalorder %s27, 0
      %p138 = por %p136, %p137
      %s139 = ssub.s32 %s21, %s28
      %p140 = scmp.eq.s32.totalorder %s139, 0
      %s142 = sadd.s32 %s141, 1
      %s143 = scalar_select %p140, %s141, %s142
      %p146 = pneg %p140
      %p147 = scmp.eq.s32.totalorder %s21, 1
      %p148 = por %p146, %p147
      %p149 = scmp.ne.s32.totalorder %s141, %s144
      %p150 = scmp.eq.s32.totalorder %s21, 0
      %p151 = por %p149, %p150
      %p152 = scmp.ne.s32.totalorder %s141, %s144
      %p153 = scmp.eq.s32.totalorder %s26, 1
      %p154 = por %p152, %p153
      %p155 = scmp.ne.s32.totalorder %s144, %s145
      %p156 = scmp.eq.s32.totalorder %s26, 0
      %p157 = por %p155, %p156
      %p158 = scmp.ne.s32.totalorder %s144, %s145
      %p159 = scmp.eq.s32.totalorder %s27, 1
      %p160 = por %p158, %p159
      %p162 = scmp.ne.s32.totalorder %s145, %s161
      %p163 = scmp.eq.s32.totalorder %s27, 0
      %p164 = por %p162, %p163
      %p165 = scmp.le.s32.totalorder 1, %s21
      %p166 = scmp.lt.s32.totalorder %s21, 3
      %p167 = pnand %p165, %p166
      %p168 = pneg %p167
      // Predicated region
      $region9: #{tpu_custom_call.1} parent=5 // pred_check
        _
      $region10: #{tpu_custom_call.1} parent=5 // pred_check_branch
        %170 = sbr.rel (%p167) target = $region12
      $region11: #{tpu_custom_call.1} parent=5 // pred_region
        %s171 = ssub.s32 %s21, 1
        // Predicated region
        $region13: #{tpu_custom_call.1} parent=11 // pred_check
          %p172 = pneg %p68
        $region14: #{tpu_custom_call.1} parent=11 // pred_check_branch
          %174 = sbr.rel (%p172) target = $region16
        $region15: #{tpu_custom_call.1} parent=11 // pred_region
          %s176 = ssub.s32 16, 16
          %177 = vsyncadd [#allocation7], %s176
          %s179 = sshll.u32 %s1, 4
          %s180 = int_to_ptr.vmem [resolvable:$true] %s179
          %182 = dma.vmem_to_smem %s180, 16, [#allocation8], [#allocation7]
        $region16: #{tpu_custom_call.1} parent=11 // pred_fallthru
          _
        // Predicated region
        $region17: #{tpu_custom_call.1} parent=11 // pred_check
          %p183 = pneg %p89
        $region18: #{tpu_custom_call.1} parent=11 // pred_check_branch
          %185 = sbr.rel (%p183) target = $region20
        $region19: #{tpu_custom_call.1} parent=11 // pred_region
          _
        $region20: #{tpu_custom_call.1} parent=11 // pred_fallthru
          _
        // Predicated region
        $region21: #{tpu_custom_call.1} parent=11 // pred_check
          %p186 = pneg %p110
        $region22: #{tpu_custom_call.1} parent=11 // pred_check_branch
          %188 = sbr.rel (%p186) target = $region24
        $region23: #{tpu_custom_call.1} parent=11 // pred_region
          %s190 = ssub.s32 16, 16
          %191 = vsyncadd [#allocation10], %s190
          %s193 = sshll.u32 %s3, 4
          %s194 = int_to_ptr.vmem [resolvable:$true] %s193
          %196 = dma.vmem_to_smem %s194, 16, [#allocation9], [#allocation10]
        $region24: #{tpu_custom_call.1} parent=11 // pred_fallthru
          _
        // Predicated region
        $region25: #{tpu_custom_call.1} parent=11 // pred_check
          %p197 = pneg %p131
        $region26: #{tpu_custom_call.1} parent=11 // pred_check_branch
          %199 = sbr.rel (%p197) target = $region28
        $region27: #{tpu_custom_call.1} parent=11 // pred_region
          _
        $region28: #{tpu_custom_call.1} parent=11 // pred_fallthru
          _
      $region12: #{tpu_custom_call.1} parent=5 // pred_fallthru
        _
      %p200 = scmp.lt.s32.totalorder %s21, 2
      // Predicated region
      $region29: #{tpu_custom_call.1} parent=5 // pred_check
        %p201 = pneg %p200
      $region30: #{tpu_custom_call.1} parent=5 // pred_check_branch
        %203 = sbr.rel (%p201) target = $region32
      $region31: #{tpu_custom_call.1} parent=5 // pred_region
        // Predicated region
        $region33: #{tpu_custom_call.1} parent=31 // pred_check
          %p204 = pneg %p41
        $region34: #{tpu_custom_call.1} parent=31 // pred_check_branch
          %206 = sbr.rel (%p204) target = $region36
        $region35: #{tpu_custom_call.1} parent=31 // pred_region
          %s207 = sand.u32 %s31, 1
          %s208 = scalar_lea.sflag [#allocation5], %s207
          %s209 = sand.u32 %s31, 1
          %s210 = smul.addr %s209, 64
          %s211 = scalar_lea.vmem [#allocation4], %s210
          %s213 = ssub.s32 1024, 1024
          %214 = vsyncadd %s208, %s213
          %s215 = smul.addr %s21, 8
          %s216 = smul.addr %s215, 128
          %s217 = scalar_lea.hbm %s0, %s216
          %s218 = sshll.u32 %s211, 4
          %s219 = int_to_ptr.vmem [resolvable:$true] %s218
          %224 = dma.hbm_to_vmem [thread:$0]  %s217, 1024, %s219, %s208, 256, 256, 16
        $region36: #{tpu_custom_call.1} parent=31 // pred_fallthru
          _
      $region32: #{tpu_custom_call.1} parent=5 // pred_fallthru
        _
      %p225 = scmp.le.s32.totalorder 1, %s21
      %p226 = scmp.lt.s32.totalorder %s21, 3
      %p227 = pnand %p225, %p226
      %p228 = pneg %p227
      // Predicated region
      $region37: #{tpu_custom_call.1} parent=5 // pred_check
        _
      $region38: #{tpu_custom_call.1} parent=5 // pred_check_branch
        %230 = sbr.rel (%p227) target = $region40
      $region39: #{tpu_custom_call.1} parent=5 // pred_region
        %s231 = ssub.s32 %s21, 1
        %s232 = sand.u32 %s34, 1
        %s233 = scalar_lea.sflag [#allocation5], %s232
        %s234 = sand.u32 %s34, 1
        %s235 = smul.addr %s234, 64
        %s236 = scalar_lea.vmem [#allocation4], %s235
        // Predicated region
        $region41: #{tpu_custom_call.1} parent=39 // pred_check
          %p237 = pneg %p47
        $region42: #{tpu_custom_call.1} parent=39 // pred_check_branch
          %239 = sbr.rel (%p237) target = $region44
        $region43: #{tpu_custom_call.1} parent=39 // pred_region
          %240 = dma.done %s233, 1024
        $region44: #{tpu_custom_call.1} parent=39 // pred_fallthru
          _
        // Predicated region
        $region45: #{tpu_custom_call.1} parent=39 // pred_check
          %p241 = pneg %p68
        $region46: #{tpu_custom_call.1} parent=39 // pred_check_branch
          %243 = sbr.rel (%p241) target = $region48
        $region47: #{tpu_custom_call.1} parent=39 // pred_region
          %244 = dma.done [#allocation7], 16
        $region48: #{tpu_custom_call.1} parent=39 // pred_fallthru
          _
        // Predicated region
        $region49: #{tpu_custom_call.1} parent=39 // pred_check
          %p245 = pneg %p110
        $region50: #{tpu_custom_call.1} parent=39 // pred_check_branch
          %247 = sbr.rel (%p245) target = $region52
        $region51: #{tpu_custom_call.1} parent=39 // pred_region
          %248 = dma.done [#allocation10], 16
        $region52: #{tpu_custom_call.1} parent=39 // pred_fallthru
          _
        %249 = sfence
        %s250 = sand.u32 %s34, 1
        %s251 = scalar_lea.sflag [#allocation5], %s250
        %s252 = sand.u32 %s34, 1
        %s253 = smul.addr %s252, 64
        %s254 = scalar_lea.vmem [#allocation4], %s253
        %p255 = pneg %p47
        %p256 = pneg %p44
        %p257 = pneg %p68
        %p258 = pneg %p65
        %p259 = pneg %p89
        %p260 = pneg %p86
        %p261 = pneg %p110
        %p262 = pneg %p107
        %p263 = pneg %p131
        %p264 = pneg %p128
        %p265 = pneg %p157
        %p266 = pneg %p154
        %s267 = sand.u32 %s144, 1
        %s268 = scalar_lea.sflag [#allocation6], %s267
        %s269 = sand.u32 %s144, 1
        %s270 = smul.addr %s269, 64
        %s271 = scalar_lea.vmem [#allocation11], %s270
        %v272 = vld [vmem:[%s236] sm:$0xff]
        %v273 = vld [vmem:[%s236 + $0x8] sm:$0xff]
        %v274 = vld [vmem:[%s236 + $0x10] sm:$0xff]
        %v275 = vld [vmem:[%s236 + $0x18] sm:$0xff]
        %v276 = vld [vmem:[%s236 + $0x20] sm:$0xff]
        %v277 = vld [vmem:[%s236 + $0x28] sm:$0xff]
        %v278 = vld [vmem:[%s236 + $0x30] sm:$0xff]
        %v279 = vld [vmem:[%s236 + $0x38] sm:$0xff]
        %v280 = vmul.f32 %v272, 0.5
        %v281 = vmul.f32 %v273, 0.5
        %v282 = vmul.f32 %v274, 0.5
        %v283 = vmul.f32 %v275, 0.5
        %v284 = vmul.f32 %v276, 0.5
        %v285 = vmul.f32 %v277, 0.5
        %v286 = vmul.f32 %v278, 0.5
        %v287 = vmul.f32 %v279, 0.5
        %v288 = vtanh.pop %v280
        %v289 = vtanh.pop %v281
        %v290 = vtanh.pop %v282
        %v291 = vtanh.pop %v283
        %v292 = vtanh.pop %v284
        %v293 = vtanh.pop %v285
        %v294 = vtanh.pop %v286
        %v295 = vtanh.pop %v287
        %v296 = vadd.f32 %v288, 1.0
        %v297 = vadd.f32 %v289, 1.0
        %v298 = vadd.f32 %v290, 1.0
        %v299 = vadd.f32 %v291, 1.0
        %v300 = vadd.f32 %v292, 1.0
        %v301 = vadd.f32 %v293, 1.0
        %v302 = vadd.f32 %v294, 1.0
        %v303 = vadd.f32 %v295, 1.0
        %v304 = vmul.f32 %v280, %v296
        %v305 = vmul.f32 %v281, %v297
        %v306 = vmul.f32 %v282, %v298
        %v307 = vmul.f32 %v283, %v299
        %v308 = vmul.f32 %v284, %v300
        %v309 = vmul.f32 %v285, %v301
        %v310 = vmul.f32 %v286, %v302
        %v311 = vmul.f32 %v287, %v303
        %vm312 = vcmask 556032
        %v313 = vsel %vm312, %v305, 0.0
        %v314 = vadd.f32 %v304, %v313
        %315 = vadd.xlane.f32.xlu0 %v314
        %v316 = vpop.xlane.xlu0 %315
        %v317 = vsel %vm312, %v307, 0.0
        %v318 = vadd.f32 %v306, %v317
        %319 = vadd.xlane.f32.xlu0 %v318
        %v320 = vpop.xlane.xlu0 %319
        %v321 = vsel %vm312, %v309, 0.0
        %v322 = vadd.f32 %v308, %v321
        %323 = vadd.xlane.f32.xlu0 %v322
        %v324 = vpop.xlane.xlu0 %323
        %v325 = vsel %vm312, %v311, 0.0
        %v326 = vadd.f32 %v310, %v325
        %327 = vadd.xlane.f32.xlu0 %v326
        %v328 = vpop.xlane.xlu0 %327
        %v329 = vmul.f32 %v316, 0.0051020407
        %v330 = vmul.f32 %v320, 0.0051020407
        %v331 = vmul.f32 %v324, 0.0051020407
        %v332 = vmul.f32 %v328, 0.0051020407
        %v333 = vlaneseq
        %v334 = vshrl.u32 %v333, 7
        %v335 = vadd.s32 %v334, 8
        %v336 = vadd.s32 %v334, 16
        %v337 = vadd.s32 %v334, 24
        %v338 = vlaneseq
        %v339 = vand.u32 %v338, 127
        %v340 = vsub.s32 %v334, %v339
        %v341 = vsub.s32 %v335, %v339
        %v342 = vsub.s32 %v336, %v339
        %v343 = vsub.s32 %v337, %v339
        %v344 = vadd.s32 %v340, 1
        %v345 = vadd.s32 %v341, 1
        %v346 = vadd.s32 %v342, 1
        %v347 = vadd.s32 %v343, 1
        %vm348 = vcmp.eq.s32.totalorder %v344, 0
        %vm349 = vcmp.eq.s32.totalorder %v345, 0
        %vm350 = vcmp.eq.s32.totalorder %v346, 0
        %vm351 = vcmp.eq.s32.totalorder %v347, 0
        %s352 = sld [smem:[#allocation8]]
        %v353 = vstv %s352
        %v354 = vsel %vm348, %v353, 0.0
        %v355 = vsel %vm349, %v353, 0.0
        %v356 = vsel %vm350, %v353, 0.0
        %v357 = vsel %vm351, %v353, 0.0
        %vm358 = vcmp.eq.s32.totalorder %v344, 1
        %vm359 = vcmp.eq.s32.totalorder %v345, 1
        %vm360 = vcmp.eq.s32.totalorder %v346, 1
        %vm361 = vcmp.eq.s32.totalorder %v347, 1
        %s362 = sld [smem:[#allocation8 + $0x1]]
        %v363 = vstv %s362
        %v364 = vsel %vm358, %v363, %v354
        %v365 = vsel %vm359, %v363, %v355
        %v366 = vsel %vm360, %v363, %v356
        %v367 = vsel %vm361, %v363, %v357
        %vm368 = vcmp.eq.s32.totalorder %v344, 2
        %vm369 = vcmp.eq.s32.totalorder %v345, 2
        %vm370 = vcmp.eq.s32.totalorder %v346, 2
        %vm371 = vcmp.eq.s32.totalorder %v347, 2
        %s372 = sld [smem:[#allocation8 + $0x2]]
        %v373 = vstv %s372
        %v374 = vsel %vm368, %v373, %v364
        %v375 = vsel %vm369, %v373, %v365
        %v376 = vsel %vm370, %v373, %v366
        %v377 = vsel %vm371, %v373, %v367
        %v378 = vmul.f32 %v329, %v374
        %v379 = vmul.f32 %v330, %v375
        %v380 = vmul.f32 %v331, %v376
        %v381 = vmul.f32 %v332, %v377
        %vm382 = vcmask 261120
        %v383 = vsel %vm382, %v378, 0.0
        %v384 = vsel %vm382, %v379, 0.0
        %v385 = vadd.f32 %v383, %v384
        %v386 = vsel %vm382, %v380, 0.0
        %v387 = vadd.f32 %v385, %v386
        %v388 = vsel %vm382, %v381, 0.0
        %v389 = vadd.f32 %v387, %v388
        %v390 = vrot.slane %v389, 4
        %v391 = vadd.f32 %v389, %v390
        %v392 = vrot.slane %v391, 2
        %v393 = vadd.f32 %v391, %v392
        %v394 = vrot.slane %v393, 1
        %v395 = vadd.f32 %v393, %v394
        %s396 = sld [smem:[#allocation2]]
        %v397 = vstv %s396
        %v398 = vadd.f32 %v395, %v397
        %v399 = vxor.u32 %v398, 2147483648
        %v400 = vmul.f32 %v399, 1.442695
        %v401 = vpow.pop %v400
        %v402 = vadd.f32 %v401, 1.0
        %v403 = vrcp.pop %v402
        %v404 = vmul.f32 1.0, %v403
        %v405 = vmul.f32 %v398, %v404
        %v406 = vadd.s32 %v340, 2
        %v407 = vadd.s32 %v341, 2
        %v408 = vadd.s32 %v342, 2
        %v409 = vadd.s32 %v343, 2
        %vm410 = vcmp.eq.s32.totalorder %v406, 0
        %vm411 = vcmp.eq.s32.totalorder %v407, 0
        %vm412 = vcmp.eq.s32.totalorder %v408, 0
        %vm413 = vcmp.eq.s32.totalorder %v409, 0
        %s414 = sld [smem:[#allocation9]]
        %v415 = vstv %s414
        %v416 = vsel %vm410, %v415, 0.0
        %v417 = vsel %vm411, %v415, 0.0
        %v418 = vsel %vm412, %v415, 0.0
        %v419 = vsel %vm413, %v415, 0.0
        %vm420 = vcmp.eq.s32.totalorder %v406, 1
        %vm421 = vcmp.eq.s32.totalorder %v407, 1
        %vm422 = vcmp.eq.s32.totalorder %v408, 1
        %vm423 = vcmp.eq.s32.totalorder %v409, 1
        %s424 = sld [smem:[#allocation9 + $0x1]]
        %v425 = vstv %s424
        %v426 = vsel %vm420, %v425, %v416
        %v427 = vsel %vm421, %v425, %v417
        %v428 = vsel %vm422, %v425, %v418
        %v429 = vsel %vm423, %v425, %v419
        %vm430 = vcmp.eq.s32.totalorder %v406, 2
        %vm431 = vcmp.eq.s32.totalorder %v407, 2
        %vm432 = vcmp.eq.s32.totalorder %v408, 2
        %vm433 = vcmp.eq.s32.totalorder %v409, 2
        %s434 = sld [smem:[#allocation9 + $0x2]]
        %v435 = vstv %s434
        %v436 = vsel %vm430, %v435, %v426
        %v437 = vsel %vm431, %v435, %v427
        %v438 = vsel %vm432, %v435, %v428
        %v439 = vsel %vm433, %v435, %v429
        %vm440 = vcmp.eq.s32.totalorder %v406, 3
        %vm441 = vcmp.eq.s32.totalorder %v407, 3
        %vm442 = vcmp.eq.s32.totalorder %v408, 3
        %vm443 = vcmp.eq.s32.totalorder %v409, 3
        %s444 = sld [smem:[#allocation9 + $0x3]]
        %v445 = vstv %s444
        %v446 = vsel %vm440, %v445, %v436
        %v447 = vsel %vm441, %v445, %v437
        %v448 = vsel %vm442, %v445, %v438
        %v449 = vsel %vm443, %v445, %v439
        %vm450 = vcmp.eq.s32.totalorder %v406, 4
        %vm451 = vcmp.eq.s32.totalorder %v407, 4
        %vm452 = vcmp.eq.s32.totalorder %v408, 4
        %vm453 = vcmp.eq.s32.totalorder %v409, 4
        %s454 = sld [smem:[#allocation9 + $0x4]]
        %v455 = vstv %s454
        %v456 = vsel %vm450, %v455, %v446
        %v457 = vsel %vm451, %v455, %v447
        %v458 = vsel %vm452, %v455, %v448
        %v459 = vsel %vm453, %v455, %v449
        %461 = vbcast.lane.b32.xlu0 %v405, 256
        %v462 = vpop.permute.xlu0 %461
        %s464 = sor.u32 256, 8
        %465 = vbcast.lane.b32.xlu0 %v405, %s464
        %v466 = vpop.permute.xlu0 %465
        %s468 = sor.u32 256, 16
        %469 = vbcast.lane.b32.xlu0 %v405, %s468
        %v470 = vpop.permute.xlu0 %469
        %s472 = sor.u32 256, 24
        %473 = vbcast.lane.b32.xlu0 %v405, %s472
        %v474 = vpop.permute.xlu0 %473
        %v475 = vmul.f32 %v462, %v456
        %v476 = vmul.f32 %v466, %v457
        %v477 = vmul.f32 %v470, %v458
        %v478 = vmul.f32 %v474, %v459
        %v479 = vsel %vm382, %v475, 0.0
        %v480 = vsel %vm382, %v476, 0.0
        %v481 = vadd.f32 %v479, %v480
        %v482 = vsel %vm382, %v477, 0.0
        %v483 = vadd.f32 %v481, %v482
        %v484 = vsel %vm382, %v478, 0.0
        %v485 = vadd.f32 %v483, %v484
        %v486 = vrot.slane %v485, 4
        %v487 = vadd.f32 %v485, %v486
        %v488 = vrot.slane %v487, 2
        %v489 = vadd.f32 %v487, %v488
        %v490 = vrot.slane %v489, 1
        %v491 = vadd.f32 %v489, %v490
        %s492 = sld [smem:[#allocation3]]
        %v493 = vstv %s492
        %v494 = vadd.f32 %v491, %v493
        %496 = vbcast.lane.b32.xlu0 %v494, 256
        %v497 = vpop.permute.xlu0 %496
        %s499 = sor.u32 256, 8
        %500 = vbcast.lane.b32.xlu0 %v494, %s499
        %v501 = vpop.permute.xlu0 %500
        %s503 = sor.u32 256, 16
        %504 = vbcast.lane.b32.xlu0 %v494, %s503
        %v505 = vpop.permute.xlu0 %504
        %s507 = sor.u32 256, 24
        %508 = vbcast.lane.b32.xlu0 %v494, %s507
        %v509 = vpop.permute.xlu0 %508
        %v510 = vadd.f32 %v272, %v497
        %v511 = vadd.f32 %v273, %v497
        %v512 = vadd.f32 %v274, %v501
        %v513 = vadd.f32 %v275, %v501
        %v514 = vadd.f32 %v276, %v505
        %v515 = vadd.f32 %v277, %v505
        %v516 = vadd.f32 %v278, %v509
        %v517 = vadd.f32 %v279, %v509
        %518 = vst [vmem:[%s271] sm:$0xff] %v510
        %519 = vst.msk [vmem:[%s271 + $0x8] sm:$0xff] %vm312, %v511
        %520 = vst [vmem:[%s271 + $0x10] sm:$0xff] %v512
        %521 = vst.msk [vmem:[%s271 + $0x18] sm:$0xff] %vm312, %v513
        %522 = vst [vmem:[%s271 + $0x20] sm:$0xff] %v514
        %523 = vst.msk [vmem:[%s271 + $0x28] sm:$0xff] %vm312, %v515
        %524 = vst [vmem:[%s271 + $0x30] sm:$0xff] %v516
        %525 = vst.msk [vmem:[%s271 + $0x38] sm:$0xff] %vm312, %v517
        %s526 = sand.u32 %s144, 1
        %s527 = scalar_lea.sflag [#allocation6], %s526
        %s528 = sand.u32 %s144, 1
        %s529 = smul.addr %s528, 64
        %s530 = scalar_lea.vmem [#allocation11], %s529
        // Predicated region
        $region53: #{tpu_custom_call.1} parent=39 // pred_check
          %p531 = pneg %p154
        $region54: #{tpu_custom_call.1} parent=39 // pred_check_branch
          %533 = sbr.rel (%p531) target = $region56
        $region55: #{tpu_custom_call.1} parent=39 // pred_region
          %s535 = ssub.s32 1024, 1024
          %536 = vsyncadd %s527, %s535
          %s537 = smul.addr %s26, 8
          %s538 = smul.addr %s537, 128
          %s539 = scalar_lea.hbm %s5, %s538
          %s540 = sshll.u32 %s530, 4
          %s541 = int_to_ptr.vmem [resolvable:$true] %s540
          %546 = dma.vmem_to_hbm [thread:$0]  %s541, 1024, %s539, %s527, 256, 256, 16
        $region56: #{tpu_custom_call.1} parent=39 // pred_fallthru
          _
      $region40: #{tpu_custom_call.1} parent=5 // pred_fallthru
        _
      %p547 = scmp.le.s32.totalorder 2, %s21
      // Predicated region
      $region57: #{tpu_custom_call.1} parent=5 // pred_check
        %p548 = pneg %p547
      $region58: #{tpu_custom_call.1} parent=5 // pred_check_branch
        %550 = sbr.rel (%p548) target = $region60
      $region59: #{tpu_custom_call.1} parent=5 // pred_region
        %s551 = ssub.s32 %s21, 2
        // Predicated region
        $region61: #{tpu_custom_call.1} parent=59 // pred_check
          %p552 = pneg %p160
        $region62: #{tpu_custom_call.1} parent=59 // pred_check_branch
          %554 = sbr.rel (%p552) target = $region64
        $region63: #{tpu_custom_call.1} parent=59 // pred_region
          %s555 = sand.u32 %s145, 1
          %s556 = scalar_lea.sflag [#allocation6], %s555
          %s557 = sand.u32 %s145, 1
          %s558 = smul.addr %s557, 64
          %s559 = scalar_lea.vmem [#allocation11], %s558
          %560 = dma.done %s556, 1024
        $region64: #{tpu_custom_call.1} parent=59 // pred_fallthru
          _
      $region60: #{tpu_custom_call.1} parent=5 // pred_fallthru
        _
    $region6: #{tpu_custom_call.1} parent=1 // loop_footer
      %s25 = sadd.s32 1, %s21
    $region7: #{tpu_custom_call.1} parent=1 // loop_footer_branch
      %20 = sbr.rel target = $region3
    $region8: #{tpu_custom_call.1} parent=1 // loop_exit
      _
    %561 = vsyncpa [#allocation5], 1
    %s562 = scalar_lea.sflag [#allocation5], 1
    %563 = vsyncpa %s562, 1
    %564 = vsyncpa [#allocation6], 1
    %s565 = scalar_lea.sflag [#allocation6], 1
    %566 = vsyncpa %s565, 1
    %567 = vsyncpa [#allocation7], 1
    %s568 = scalar_lea.sflag [#allocation7], 1
    %569 = vsyncpa %s568, 1
    %570 = vsyncpa [#allocation10], 1

</llo_original>
